<compile_context>
chip_gen: v7x
topology: tpu7x:2x2x1
jax: 0.10.0
libtpu: 0.0.40
codegen_flags: <defaults>
</compile_context>

<pallas_src>
import jax
import jax.numpy as jnp
from jax.experimental import pallas as pl
from jax.experimental.pallas import tpu as pltpu


# ----------------------------- Pallas kernel ------------------------------- #

def _freqconv_1x1_kernel(w_ref, x_ref, o_ref):
    # w_ref : (C_out, C_in)       weight (tiny, VMEM-resident across steps)
    # x_ref : (1, C_in,  TILE_P)  interleaved real/imag pixels on lanes
    # o_ref : (1, C_out, TILE_P)
    # Memory-bound kernel: the small-M/K matmul runs in MXU slack while DMA
    # streams the lane-dense pixel axis.
    o_ref[0] = jnp.dot(w_ref[...], x_ref[0], preferred_element_type=jnp.float32)


# --------------------------- Tile-size heuristic ---------------------------- #

def _choose_tile_p(P, c_in, c_out, batch,
                   stream_budget=8 << 20, vmem_budget=20 << 20):
    """Pick the pixel-tile width (multiple of 128, or the full axis).

    stream_budget: streamed HBM bytes per grid step (amortizes ~0.35us/step).
    vmem_budget:   double-buffered, sublane-padded VMEM footprint of the
                   streamed blocks (kept well under v7x's 64 MiB physical).
    """
    if P <= 256:
        return P                                   # full-dim block is allowed

    def pad8(c):
        return -(-c // 8) * 8                      # sublane padding

    stream_cols = stream_budget // (4 * (c_in + c_out))
    vmem_cols = vmem_budget // (4 * 2 * (pad8(c_in) + pad8(c_out)))
    cap = max(128, (min(stream_cols, vmem_cols) // 128) * 128)
    tile = min(P, cap)
    if tile < P:
        tile = max(128, (tile // 128) * 128)       # lane-dense blocks

    # Keep >=2 grid steps so both v7x TensorCores get work.
    if batch == 1 and tile == P:
        tile = max(128, (((P + 1) // 2) // 128) * 128)
    return tile


# --------------------------- Channel-mix launcher --------------------------- #

def _channel_mix(weight, x2, batch_shift):
    """y[b_out, :, p] = weight @ x2[(b_out + batch_shift) % B, :, p].

    weight: (C_out, C_in) f32; x2: (B, C_in, P) f32 (P = 2*H*W, interleaved).
    Returns (B, C_out, P) f32.
    """
    B, c_in, P = x2.shape
    c_out = weight.shape[0]
    tile_p = _choose_tile_p(P, c_in, c_out, B)
    grid = (B, pl.cdiv(P, tile_p))                 # ragged last tile is clipped

    if batch_shift % B == 0:
        x_map = lambda b, t: (b, 0, t)
    else:
        s = batch_shift % B
        x_map = lambda b, t: ((b + s) % B, 0, t)   # folds the batch ifftshift

    w_spec = pl.BlockSpec((c_out, c_in), lambda b, t: (0, 0))
    x_spec = pl.BlockSpec((1, c_in, tile_p), x_map)
    o_spec = pl.BlockSpec((1, c_out, tile_p), lambda b, t: (b, 0, t))

    return pl.pallas_call(
        _freqconv_1x1_kernel,
        grid=grid,
        in_specs=[w_spec, x_spec],
        out_specs=o_spec,
        out_shape=jax.ShapeDtypeStruct((B, c_out, P), jnp.float32),
        compiler_params=pltpu.CompilerParams(
            dimension_semantics=("parallel", "parallel"),
            vmem_limit_bytes=32 << 20),
    )(weight, x2)


# ------------------------------- Wrapper ------------------------------------ #

def freqconv_1x1_ifft(x, weight):
    """x: (B, C_in, H, W) complex64 frequency-domain input.
    weight: (C_out, C_in) float32 (torch.nn.Linear weight layout, no bias).
    Returns (B, C_out, H, W) float32."""
    B, c_in, H, W = x.shape
    c_out = weight.shape[0]
    P = 2 * H * W

    # Single fused pass: complex -> interleaved f32 (B, C_in, 2*H*W).
    x2 = jnp.stack([jnp.real(x), jnp.imag(x)], axis=-1)
    x2 = x2.astype(jnp.float32).reshape(B, c_in, P)

    # Channel component of the all-axes ifftshift == rolling the output
    # channels == rolling the rows of W (free, tiny array).
    w_eff = jnp.roll(weight.astype(jnp.float32), -(c_out // 2), axis=0)

    # Batch component of the ifftshift is folded into the input index_map.
    y2 = _channel_mix(w_eff, x2, batch_shift=B // 2)       # (B, C_out, P)

    # Single fused pass: interleaved f32 -> complex64 for the FFT.
    y5 = y2.reshape(B, c_out, H, W, 2)
    y = jax.lax.complex(y5[..., 0], y5[..., 1])            # (B, C_out, H, W)

    # TODO(synk): ifft2 has no Pallas TPU primitive; it stays in XLA.
    if H % 2 == 0 and W % 2 == 0:
        # Spatial ifftshift before an IFFT == (-1)^(h+w) modulation after it
        # (even sizes only); fuses into the .real extraction, no extra pass.
        sign_h = 1.0 - 2.0 * (jnp.arange(H) % 2).astype(jnp.float32)
        sign_w = 1.0 - 2.0 * (jnp.arange(W) % 2).astype(jnp.float32)
        sign = sign_h[:, None] * sign_w[None, :]
        return jnp.fft.ifft2(y).real * sign
    else:
        # Odd spatial size: the shift is a complex phase, not +-1 -> do it
        # explicitly (batch/channel components are already folded above).
        y = jnp.fft.ifftshift(y, axes=(-2, -1))
        return jnp.fft.ifft2(y).real


# ------------------------------ Reference ----------------------------------- #

def reference(x, weight):
    """Pure-JAX mirror of the PyTorch forward (for verification)."""
    yr = jnp.einsum('bchw,oc->bohw', jnp.real(x).astype(jnp.float32), weight)
    yi = jnp.einsum('bchw,oc->bohw', jnp.imag(x).astype(jnp.float32), weight)
    y = jax.lax.complex(yr, yi)
    return jnp.fft.ifft2(jnp.fft.ifftshift(y)).real


# --------------------------------- Main ------------------------------------- #

if __name__ == "__main__":
    key = jax.random.PRNGKey(0)
    kr, ki, kw = jax.random.split(key, 3)
    B, C_in, C_out, H, W = 2, 4, 8, 16, 16

    xr0 = jax.random.normal(kr, (B, C_in, H, W), jnp.float32)
    xi0 = jax.random.normal(ki, (B, C_in, H, W), jnp.float32)
    x = jax.lax.complex(xr0, xi0)                       # complex64 spectrum
    weight = 0.2 * jax.random.normal(kw, (C_out, C_in), jnp.float32)

    out = jax.jit(freqconv_1x1_ifft)(x, weight)
    out = jax.block_until_ready(out)

    ref = reference(x, weight)
    assert out.shape == (B, C_out, H, W)
    assert out.dtype == jnp.float32
    assert jnp.allclose(out, ref, rtol=1e-2, atol=1e-2)
    print("KERNEL_OK")
</pallas_src>

<mosaic_0001>
module attributes {stable_mosaic.version = 11 : i64} {
  func.func @_freqconv_1x1_kernel(%arg0: i32, %arg1: i32, %arg2: memref<8x4xf32, #tpu.memory_space<vmem>>, %arg3: memref<1x4x512xf32, #tpu.memory_space<vmem>>, %arg4: memref<1x8x512xf32, #tpu.memory_space<vmem>>) attributes {dimension_semantics = [#tpu.dimension_semantics<parallel>, #tpu.dimension_semantics<parallel>], iteration_bounds = array<i64: 2, 1>, scalar_prefetch = 0 : i64, scratch_operands = 0 : i64, tpu.core_type = #tpu.core_type<tc>, window_params = [{pipeline_mode = #tpu.pipeline_mode<synchronous>, transform_indices = @transform_0, window_bounds = array<i64: 8, 4>}, {transform_indices = @transform_1, window_bounds = array<i64: 1, 4, 512>}, {transform_indices = @transform_2, window_bounds = array<i64: 1, 8, 512>}]} {
    %c0 = arith.constant 0 : index
    %c0_0 = arith.constant 0 : index
    %0 = vector.load %arg2[%c0, %c0_0] : memref<8x4xf32, #tpu.memory_space<vmem>>, vector<8x4xf32>
    %c0_1 = arith.constant 0 : index
    %c0_2 = arith.constant 0 : index
    %c0_3 = arith.constant 0 : index
    %1 = vector.load %arg3[%c0_1, %c0_2, %c0_3] : memref<1x4x512xf32, #tpu.memory_space<vmem>>, vector<1x4x512xf32>
    %2 = vector.shape_cast %1 : vector<1x4x512xf32> to vector<4x512xf32>
    %cst = arith.constant dense<0.000000e+00> : vector<8x512xf32>
    %3 = tpu.matmul %0, %2, %cst {dimension_numbers = #tpu.dot_dimension_numbers<[1], [0], [0], [1], [0, 0, 1, 1], [], []>} : vector<8x4xf32>, vector<4x512xf32>, vector<8x512xf32> -> vector<8x512xf32>
    %c0_4 = arith.constant 0 : index
    %c0_5 = arith.constant 0 : index
    %c0_6 = arith.constant 0 : index
    %4 = vector.load %arg4[%c0_4, %c0_5, %c0_6] : memref<1x8x512xf32, #tpu.memory_space<vmem>>, vector<1x8x512xf32>
    %5 = vector.shape_cast %4 : vector<1x8x512xf32> to vector<8x512xf32>
    %6 = vector.shape_cast %3 : vector<8x512xf32> to vector<1x8x512xf32>
    tpu.vector_store %arg4[%c0_4, %c0_5, %c0_6], %6 {strides = array<i32>} : memref<1x8x512xf32, #tpu.memory_space<vmem>>, vector<1x8x512xf32>,
    return
  }
  func.func @transform_0(%arg0: i32, %arg1: i32) -> (i32, i32) {
    %c0_i32 = arith.constant 0 : i32
    %c0_i32_0 = arith.constant 0 : i32
    %c0_i32_1 = arith.constant 0 : i32
    return %c0_i32, %c0_i32_0 : i32, i32
  }
  func.func @transform_1(%arg0: i32, %arg1: i32) -> (i32, i32, i32) {
    %c1_i32 = arith.constant 1 : i32
    %0 = arith.addi %arg0, %c1_i32 : i32
    %c2_i32 = arith.constant 2 : i32
    %c0_i32 = arith.constant 0 : i32
    %1 = arith.cmpi eq, %c2_i32, %c0_i32 : i32
    %c1_i32_0 = arith.constant 1 : i32
    %2 = arith.select %1, %c1_i32_0, %c2_i32 : i32
    %3 = arith.remsi %0, %2 : i32
    %c0_i32_1 = arith.constant 0 : i32
    %4 = arith.cmpi ne, %3, %c0_i32_1 : i32
    %c0_i32_2 = arith.constant 0 : i32
    %5 = arith.cmpi slt, %3, %c0_i32_2 : i32
    %c0_i32_3 = arith.constant 0 : i32
    %6 = arith.cmpi slt, %2, %c0_i32_3 : i32
    %7 = arith.xori %5, %6 : i1
    %8 = arith.andi %7, %4 : i1
    %9 = arith.addi %3, %2 : i32
    %10 = arith.select %8, %9, %3 : i32
    %c0_i32_4 = arith.constant 0 : i32
    %c0_i32_5 = arith.constant 0 : i32
    return %10, %c0_i32_4, %arg1 : i32, i32, i32
  }
  func.func @transform_2(%arg0: i32, %arg1: i32) -> (i32, i32, i32) {
    %c0_i32 = arith.constant 0 : i32
    %c0_i32_0 = arith.constant 0 : i32
    return %arg0, %c0_i32, %arg1 : i32, i32, i32
  }
}

</mosaic_0001>

<llo_original>
// kernel: custom-call
$region0: #{custom-call}
  %s0 = inlined_call_operand.hbm [shape: c64[2,4,16,16], index: 0, kind: input, shape index: {}]
  %s1 = inlined_call_operand.vmem [shape: f32[2,4,16,16], index: 1, kind: output, shape index: {}]
  $region1: #{custom-call} parent=0
    #allocation0 [shape = 's32[1]{0}', space=sflag, size = 0x4, scoped, tag = 'scoped memory for custom-call']
    %2 = vsyncpa [#allocation0], 0
    %s3 = sshll.u32 %s1, 4
    %s4 = int_to_ptr.vmem [resolvable:$true] %s3
    %6 = dma.hbm_to_vmem [thread:$0]  %s0, 2048, %s4, [#allocation0]
    %7 = dma.done [#allocation0], 2048
    %8 = vsyncpa [#allocation0], 1

// kernel: custom-call.1
$region0: #{custom-call.1}
  %s0 = inlined_call_operand.hbm [shape: c64[2,4,16,16], index: 0, kind: input, shape index: {}]
  %s1 = inlined_call_operand.vmem [shape: f32[2,4,16,16], index: 1, kind: output, shape index: {}]
  %s2 = scalar_lea.hbm %s0, 2048
  $region1: #{custom-call.1} parent=0
    #allocation0 [shape = 's32[1]{0}', space=sflag, size = 0x4, scoped, tag = 'scoped memory for custom-call.1']
    %3 = vsyncpa [#allocation0], 0
    %s4 = sshll.u32 %s1, 4
    %s5 = int_to_ptr.vmem [resolvable:$true] %s4
    %7 = dma.hbm_to_vmem [thread:$0]  %s2, 2048, %s5, [#allocation0]
    %8 = dma.done [#allocation0], 2048
    %9 = vsyncpa [#allocation0], 1

// kernel: freqconv_1x1_ifft.1
$region0: #{freqconv_1x1_ifft.1}
  #allocation0 [shape = 'u32[]', space=smem, size = 0x4, offset = 0x4, fixed_abs, tag = 'smem constant byte address 0x4 - core index']
  #allocation1 [shape = 'u32[144,128]{1,0:T(1,128)}', space=vmem, size = 0x12000, scoped, tag = 'internal scratch']
  %s0 = inlined_call_operand.vmem [shape: f32[8,4], index: 0, kind: input, shape index: {}]
  %s1 = inlined_call_operand.vmem [shape: f32[2,4,512], index: 1, kind: input, shape index: {}]
  %s2 = inlined_call_operand.vmem [shape: f32[2,8,512], index: 2, kind: output, shape index: {}]
  %s3 = sld [smem:[#allocation0]]
  $region41: #{freqconv_1x1_ifft.1} parent=0
    _
  %s5 = ssub.s32 1, %s3
  %s6 = scalar_select 0, %s5, %s3
  loop: start=0, step=1, limit=4
  $region2: #{freqconv_1x1_ifft.1} parent=0 // loop_pre_header
    _
  $region3: #{freqconv_1x1_ifft.1} parent=0 // loop_header
    %s8 = sphi 0, %s12
    %p9 = scmp.ge.s32.totalorder %s8, 4
    %s15 = sphi 0, %s27
    %s16 = sphi 0, %s23
    %s17 = sphi 0, %s15
    %s18 = sphi 0, %s16
    %s19 = sphi 0, %s17
    %s20 = sphi 0, %s18
    %s28 = sphi 0, %s28
    %s30 = sphi 0, %s28
    %s31 = sphi 0, %s30
    %s45 = sphi 0, %s31
    %s79 = sphi 0, %s81
    %s82 = sphi 0, %s79
    %s83 = sphi 0, %s82
    %s99 = sphi 0, %s83
    %s107 = sphi 0, %s109
    %s110 = sphi 0, %s107
    %s111 = sphi 0, %s110
    %s127 = sphi 0, %s111
  $region4: #{freqconv_1x1_ifft.1} parent=0 // loop_header_branch
    %11 = sbr.rel (%p9) target = $region8
  $region5: #{freqconv_1x1_ifft.1} parent=0 // loop_body
    %s13 = ssub.s32 %s8, 1
    %s14 = ssub.s32 %s8, 2
    %s21 = sadd.s32 1, %s16
    %p22 = scmp.ge.s32.totalorder %s21, 1
    %s23 = scalar_select %p22, 0, %s21
    %s24 = sadd.s32 1, %s15
    %s25 = scalar_select %p22, %s24, %s15
    %p26 = scmp.ge.s32.totalorder %s25, 2
    %s27 = scalar_select %p26, 0, %s25
    %s29 = sadd.s32 %s28, 1
    %p32 = scmp.eq.s32.totalorder %s8, 1
    %p33 = scmp.ne.s32.totalorder %s28, %s30
    %p34 = scmp.eq.s32.totalorder %s8, 0
    %p35 = por %p33, %p34
    %p36 = scmp.ne.s32.totalorder %s28, %s30
    %p37 = scmp.eq.s32.totalorder %s13, 1
    %p38 = por %p36, %p37
    %p39 = scmp.ne.s32.totalorder %s30, %s31
    %p40 = scmp.eq.s32.totalorder %s13, 0
    %p41 = por %p39, %p40
    %p42 = scmp.ne.s32.totalorder %s30, %s31
    %p43 = scmp.eq.s32.totalorder %s14, 1
    %p44 = por %p42, %p43
    %p46 = scmp.ne.s32.totalorder %s31, %s45
    %p47 = scmp.eq.s32.totalorder %s14, 0
    %p48 = por %p46, %p47
    %s49 = sadd.s32 %s15, 1
    %p50 = scmp.lt.s32.totalorder %s49, 0
    %s51 = ssub.s32 0, %s49
    %s52 = scalar_select %p50, %s51, %s49
    %s53 = sand.u32 %s52, 1
    %s54 = ssub.s32 0, %s53
    %s55 = scalar_select %p50, %s54, %s53
    %p56 = scmp.ne.s32.totalorder %s55, 0
    %p57 = scmp.lt.s32.totalorder %s55, 0
    %p58 = pnand %p57, %p56
    %p59 = pneg %p58
    %s60 = sadd.s32 %s55, 2
    %s61 = scalar_select %p59, %s60, %s55
    %s62 = sadd.s32 %s27, 1
    %p63 = scmp.lt.s32.totalorder %s62, 0
    %s64 = ssub.s32 0, %s62
    %s65 = scalar_select %p63, %s64, %s62
    %s66 = sand.u32 %s65, 1
    %s67 = ssub.s32 0, %s66
    %s68 = scalar_select %p63, %s67, %s66
    %p69 = scmp.ne.s32.totalorder %s68, 0
    %p70 = scmp.lt.s32.totalorder %s68, 0
    %p71 = pnand %p70, %p69
    %p72 = pneg %p71
    %s73 = sadd.s32 %s68, 2
    %s74 = scalar_select %p72, %s73, %s68
    %s75 = ssub.s32 %s61, %s74
    %s76 = ssub.s32 %s16, %s23
    %s77 = sor.u32 %s75, %s76
    %p78 = scmp.eq.s32.totalorder %s77, 0
    %s80 = sadd.s32 %s79, 1
    %s81 = scalar_select %p78, %s79, %s80
    %p84 = pneg %p78
    %p85 = scmp.eq.s32.totalorder %s8, 1
    %p86 = por %p84, %p85
    %p87 = scmp.ne.s32.totalorder %s79, %s82
    %p88 = scmp.eq.s32.totalorder %s8, 0
    %p89 = por %p87, %p88
    %p90 = scmp.ne.s32.totalorder %s79, %s82
    %p91 = scmp.eq.s32.totalorder %s13, 1
    %p92 = por %p90, %p91
    %p93 = scmp.ne.s32.totalorder %s82, %s83
    %p94 = scmp.eq.s32.totalorder %s13, 0
    %p95 = por %p93, %p94
    %p96 = scmp.ne.s32.totalorder %s82, %s83
    %p97 = scmp.eq.s32.totalorder %s14, 1
    %p98 = por %p96, %p97
    %p100 = scmp.ne.s32.totalorder %s83, %s99
    %p101 = scmp.eq.s32.totalorder %s14, 0
    %p102 = por %p100, %p101
    %s103 = ssub.s32 %s15, %s27
    %s104 = ssub.s32 %s16, %s23
    %s105 = sor.u32 %s103, %s104
    %p106 = scmp.eq.s32.totalorder %s105, 0
    %s108 = sadd.s32 %s107, 1
    %s109 = scalar_select %p106, %s107, %s108
    %p112 = pneg %p106
    %p113 = scmp.eq.s32.totalorder %s8, 1
    %p114 = por %p112, %p113
    %p115 = scmp.ne.s32.totalorder %s107, %s110
    %p116 = scmp.eq.s32.totalorder %s8, 0
    %p117 = por %p115, %p116
    %p118 = scmp.ne.s32.totalorder %s107, %s110
    %p119 = scmp.eq.s32.totalorder %s13, 1
    %p120 = por %p118, %p119
    %p121 = scmp.ne.s32.totalorder %s110, %s111
    %p122 = scmp.eq.s32.totalorder %s13, 0
    %p123 = por %p121, %p122
    %p124 = scmp.ne.s32.totalorder %s110, %s111
    %p125 = scmp.eq.s32.totalorder %s14, 1
    %p126 = por %p124, %p125
    %p128 = scmp.ne.s32.totalorder %s111, %s127
    %p129 = scmp.eq.s32.totalorder %s14, 0
    %p130 = por %p128, %p129
    %p131 = scmp.le.s32.totalorder 1, %s8
    %p132 = scmp.lt.s32.totalorder %s8, 3
    %p133 = pnand %p131, %p132
    %p134 = pneg %p133
    // Predicated region
    $region9: #{freqconv_1x1_ifft.1} parent=5 // pred_check
      _
    $region10: #{freqconv_1x1_ifft.1} parent=5 // pred_check_branch
      %136 = sbr.rel (%p133) target = $region12
    $region11: #{freqconv_1x1_ifft.1} parent=5 // pred_region
      %s137 = ssub.s32 %s8, 1
      // Predicated region
      $region13: #{freqconv_1x1_ifft.1} parent=11 // pred_check
        %p138 = pneg %p41
      $region14: #{freqconv_1x1_ifft.1} parent=11 // pred_check_branch
        %140 = sbr.rel (%p138) target = $region16
      $region15: #{freqconv_1x1_ifft.1} parent=11 // pred_region
        _
      $region16: #{freqconv_1x1_ifft.1} parent=11 // pred_fallthru
        _
    $region12: #{freqconv_1x1_ifft.1} parent=5 // pred_fallthru
      _
    %p141 = scmp.lt.s32.totalorder %s8, 2
    // Predicated region
    $region17: #{freqconv_1x1_ifft.1} parent=5 // pred_check
      %p142 = pneg %p141
    $region18: #{freqconv_1x1_ifft.1} parent=5 // pred_check_branch
      %144 = sbr.rel (%p142) target = $region20
    $region19: #{freqconv_1x1_ifft.1} parent=5 // pred_region
      // Predicated region
      $region21: #{freqconv_1x1_ifft.1} parent=19 // pred_check
        %p145 = pneg %p89
      $region22: #{freqconv_1x1_ifft.1} parent=19 // pred_check_branch
        %147 = sbr.rel (%p145) target = $region24
      $region23: #{freqconv_1x1_ifft.1} parent=19 // pred_region
        %s148 = sadd.s32 %s15, 1
        %p149 = scmp.lt.s32.totalorder %s148, 0
        %s150 = ssub.s32 0, %s148
        %s151 = scalar_select %p149, %s150, %s148
        %s152 = sand.u32 %s151, 1
        %s153 = ssub.s32 0, %s152
        %s154 = scalar_select %p149, %s153, %s152
        %p155 = scmp.ne.s32.totalorder %s154, 0
        %p156 = scmp.lt.s32.totalorder %s154, 0
        %p157 = pnand %p156, %p155
        %p158 = pneg %p157
        %s159 = sadd.s32 %s154, 2
        %s160 = scalar_select %p158, %s159, %s154
        %s161 = smul.u32 4, %s16
        %p162 = scmp.lt.s32.totalorder %s160, 1
        %s163 = scalar_select %p162, %s160, 1
        %p164 = scmp.lt.s32.totalorder %s161, 3
        %s165 = scalar_select %p164, %s161, 3
        %s166 = smul.addr %s163, 4
        %s167 = sadd.s32 %s165, %s166
        %s168 = smul.addr %s167, 4
        %s169 = scalar_lea.vmem %s1, %s168
        %s170 = sadd.s32 %s15, 1
        %p171 = scmp.lt.s32.totalorder %s170, 0
        %s172 = ssub.s32 0, %s170
        %s173 = scalar_select %p171, %s172, %s170
        %s174 = sand.u32 %s173, 1
        %s175 = ssub.s32 0, %s174
        %s176 = scalar_select %p171, %s175, %s174
        %p177 = scmp.ne.s32.totalorder %s176, 0
        %p178 = scmp.lt.s32.totalorder %s176, 0
        %p179 = pnand %p178, %p177
        %p180 = pneg %p179
        %s181 = sadd.s32 %s176, 2
        %s182 = scalar_select %p180, %s181, %s176
        %s183 = smul.u32 4, %s16
      $region24: #{freqconv_1x1_ifft.1} parent=19 // pred_fallthru
        _
    $region20: #{freqconv_1x1_ifft.1} parent=5 // pred_fallthru
      _
    %p184 = scmp.le.s32.totalorder 1, %s8
    %p185 = scmp.lt.s32.totalorder %s8, 3
    %p186 = pnand %p184, %p185
    %p187 = pneg %p186
    // Predicated region
    $region25: #{freqconv_1x1_ifft.1} parent=5 // pred_check
      _
    $region26: #{freqconv_1x1_ifft.1} parent=5 // pred_check_branch
      %189 = sbr.rel (%p186) target = $region28
    $region27: #{freqconv_1x1_ifft.1} parent=5 // pred_region
      %s190 = ssub.s32 %s8, 1
      %p191 = pneg %p41
      %p192 = pneg %p38
      %s193 = sadd.s32 %s17, 1
      %p194 = scmp.lt.s32.totalorder %s193, 0
      %s195 = ssub.s32 0, %s193
      %s196 = scalar_select %p194, %s195, %s193
      %s197 = sand.u32 %s196, 1
      %s198 = ssub.s32 0, %s197
      %s199 = scalar_select %p194, %s198, %s197
      %p200 = scmp.ne.s32.totalorder %s199, 0
      %p201 = scmp.lt.s32.totalorder %s199, 0
      %p202 = pnand %p201, %p200
      %p203 = pneg %p202
      %s204 = sadd.s32 %s199, 2
      %s205 = scalar_select %p203, %s204, %s199
      %s206 = smul.u32 4, %s18
      %p207 = scmp.lt.s32.totalorder %s205, 1
      %s208 = scalar_select %p207, %s205, 1
      %p209 = scmp.lt.s32.totalorder %s206, 3
      %s210 = scalar_select %p209, %s206, 3
      %s211 = smul.addr %s208, 4
      %s212 = sadd.s32 %s210, %s211
      %s213 = smul.addr %s212, 4
      %s214 = scalar_lea.vmem %s1, %s213
      %p215 = pneg %p95
      %p216 = pneg %p92
      %p217 = pneg %p123
      %p218 = pneg %p120
      %s219 = smul.u32 4, %s18
      %p220 = scmp.lt.s32.totalorder %s17, 1
      %s221 = scalar_select %p220, %s17, 1
      %p222 = scmp.lt.s32.totalorder %s219, 3
      %s223 = scalar_select %p222, %s219, 3
      %s224 = smul.addr %s221, 4
      %s225 = sadd.s32 %s223, %s224
      %s226 = smul.addr %s225, 8
      %s227 = scalar_lea.vmem %s2, %s226
      %s228 = sadd.s32 %s17, 1
      %p229 = scmp.lt.s32.totalorder %s228, 0
      %s230 = ssub.s32 0, %s228
      %s231 = scalar_select %p229, %s230, %s228
      %s232 = sand.u32 %s231, 1
      %s233 = ssub.s32 0, %s232
      %s234 = scalar_select %p229, %s233, %s232
      %p235 = scmp.ne.s32.totalorder %s234, 0
      %p236 = scmp.lt.s32.totalorder %s234, 0
      %p237 = pnand %p236, %p235
      %p238 = pneg %p237
      %s239 = sadd.s32 %s234, 2
      %s240 = scalar_select %p238, %s239, %s234
      %s241 = smul.u32 4, %s18
      %p242 = scmp.lt.s32.totalorder %s240, 1
      %s243 = scalar_select %p242, %s240, 1
      %p244 = scmp.lt.s32.totalorder %s241, 3
      %s245 = scalar_select %p244, %s241, 3
      %s246 = smul.addr %s243, 4
      %s247 = sadd.s32 %s245, %s246
      %s248 = smul.addr %s247, 4
      %s249 = scalar_lea.vmem %s1, %s248
      %s250 = sadd.s32 %s17, 1
      %p251 = scmp.lt.s32.totalorder %s250, 0
      %s252 = ssub.s32 0, %s250
      %s253 = scalar_select %p251, %s252, %s250
      %s254 = sand.u32 %s253, 1
      %s255 = ssub.s32 0, %s254
      %s256 = scalar_select %p251, %s255, %s254
      %p257 = scmp.ne.s32.totalorder %s256, 0
      %p258 = scmp.lt.s32.totalorder %s256, 0
      %p259 = pnand %p258, %p257
      %p260 = pneg %p259
      %s261 = sadd.s32 %s256, 2
      %s262 = scalar_select %p260, %s261, %s256
      %s263 = smul.u32 4, %s18
      %s264 = smul.u32 4, %s18
      %p265 = scmp.lt.s32.totalorder %s17, 1
      %s266 = scalar_select %p265, %s17, 1
      %p267 = scmp.lt.s32.totalorder %s264, 3
      %s268 = scalar_select %p267, %s264, 3
      %s269 = smul.addr %s266, 4
      %s270 = sadd.s32 %s268, %s269
      %s271 = smul.addr %s270, 8
      %s272 = scalar_lea.vmem %s2, %s271
      %s273 = smul.u32 4, %s18
      %v274 = vld [vmem:[%s0] sm:$0xff]
      %v275 = vld [vmem:[%s249] sm:$0xff]
      %v276 = vld [vmem:[%s249 + $0x8] sm:$0xff]
      %v279 = vcombine.high %v275, %v275
      %v280 = vcombine.high %v276, %v276
      %vm281 = vcmask 31744
      %v283 = vsel %vm281, %v274, 0
      %vm285 = vcmask 1043456
      %v286 = vsel %vm285, %v275, 0
      %v288 = vsel %vm285, %v279, 0
      %v290 = vsel %vm285, %v276, 0
      %v292 = vsel %vm285, %v280, 0
      %294 = vmatprep.subr.mxu0 %v288
      %295 = vmatpush1.msra.mxu0 %v286
      %296 = vmatprep.subr.mxu0 0.0
      %297 = vmatpush1.msra.mxu0 0.0
      %298 = vmatprep.subr.mxu0 0.0
      %299 = vmatpush1.msra.mxu0 0.0
      %300 = vmatprep.subr.mxu0 0.0
      %301 = vmatpush1.msra.mxu0 0.0
      %302 = vmatprep.subr.mxu0 0.0
      %303 = vmatpush1.msra.mxu0 0.0
      %304 = vmatprep.subr.mxu0 0.0
      %305 = vmatpush1.msra.mxu0 0.0
      %306 = vmatprep.subr.mxu0 0.0
      %307 = vmatpush1.msra.mxu0 0.0
      %308 = vmatprep.subr.mxu0 0.0
      %309 = vmatpush1.msra.mxu0 0.0
      %310 = vmatprep.subr.mxu0 0.0
      %311 = vmatpush1.msra.mxu0 0.0
      %312 = vmatprep.subr.mxu0 0.0
      %313 = vmatpush1.msra.mxu0 0.0
      %314 = vmatprep.subr.mxu0 0.0
      %315 = vmatpush1.msra.mxu0 0.0
      %316 = vmatprep.subr.mxu0 0.0
      %317 = vmatpush1.msra.mxu0 0.0
      %318 = vmatprep.subr.mxu0 0.0
      %319 = vmatpush1.msra.mxu0 0.0
      %320 = vmatprep.subr.mxu0 0.0
      %321 = vmatpush1.msra.mxu0 0.0
      %322 = vmatprep.subr.mxu0 0.0
      %323 = vmatpush1.msra.mxu0 0.0
      %324 = vmatprep.subr.mxu0 0.0
      %325 = vmatpush1.msra.mxu0 0.0
      %326 = vmatprep.subr.mxu0 0.0
      %327 = vmatpush1.msra.mxu0 0.0
      %328 = vmatprep.subr.mxu0 0.0
      %329 = vmatpush1.msra.mxu0 0.0
      %330 = vmatprep.subr.mxu0 0.0
      %331 = vmatpush1.msra.mxu0 0.0
      %332 = vmatprep.subr.mxu0 0.0
      %333 = vmatpush1.msra.mxu0 0.0
      %334 = vmatprep.subr.mxu0 0.0
      %335 = vmatpush1.msra.mxu0 0.0
      %336 = vmatprep.subr.mxu0 0.0
      %337 = vmatpush1.msra.mxu0 0.0
      %338 = vmatprep.subr.mxu0 0.0
      %339 = vmatpush1.msra.mxu0 0.0
      %340 = vmatprep.subr.mxu0 0.0
      %341 = vmatpush1.msra.mxu0 0.0
      %342 = vmatprep.subr.mxu0 0.0
      %343 = vmatpush1.msra.mxu0 0.0
      %344 = vmatprep.subr.mxu0 0.0
      %345 = vmatpush1.msra.mxu0 0.0
      %346 = vmatprep.subr.mxu0 0.0
      %347 = vmatpush1.msra.mxu0 0.0
      %348 = vmatprep.subr.mxu0 0.0
      %349 = vmatpush1.msra.mxu0 0.0
      %350 = vmatprep.subr.mxu0 0.0
      %351 = vmatpush1.msra.mxu0 0.0
      %352 = vmatprep.subr.mxu0 0.0
      %353 = vmatpush1.msra.mxu0 0.0
      %354 = vmatprep.subr.mxu0 0.0
      %355 = vmatpush1.msra.mxu0 0.0
      %356 = vmatprep.subr.mxu0 0.0
      %357 = vmatpush1.msra.mxu0 0.0
      %358 = vmatprep.mubr.f32.mxu0 0.0
      %359 = vmatmul.mubr.f32.gmra.mrb[0].mxu0 %v283
      %v360 = vpop.f32.mrb[0].mxu0
      %v361 = vadd.f32 0.0, %v360
      %v362 = vpop.f32.mrb[0].mxu0
      %v363 = vadd.f32 0.0, %v362
      %364 = vdwg.mxu0
      %365 = vmatprep.subr.mxu0 %v292
      %366 = vmatpush1.msra.mxu0 %v290
      %367 = vmatprep.subr.mxu0 0.0
      %368 = vmatpush1.msra.mxu0 0.0
      %369 = vmatprep.subr.mxu0 0.0
      %370 = vmatpush1.msra.mxu0 0.0
      %371 = vmatprep.subr.mxu0 0.0
      %372 = vmatpush1.msra.mxu0 0.0
      %373 = vmatprep.subr.mxu0 0.0
      %374 = vmatpush1.msra.mxu0 0.0
      %375 = vmatprep.subr.mxu0 0.0
      %376 = vmatpush1.msra.mxu0 0.0
      %377 = vmatprep.subr.mxu0 0.0
      %378 = vmatpush1.msra.mxu0 0.0
      %379 = vmatprep.subr.mxu0 0.0
      %380 = vmatpush1.msra.mxu0 0.0
      %381 = vmatprep.subr.mxu0 0.0
      %382 = vmatpush1.msra.mxu0 0.0
      %383 = vmatprep.subr.mxu0 0.0
      %384 = vmatpush1.msra.mxu0 0.0
      %385 = vmatprep.subr.mxu0 0.0
      %386 = vmatpush1.msra.mxu0 0.0
      %387 = vmatprep.subr.mxu0 0.0
      %388 = vmatpush1.msra.mxu0 0.0
      %389 = vmatprep.subr.mxu0 0.0
      %390 = vmatpush1.msra.mxu0 0.0
      %391 = vmatprep.subr.mxu0 0.0
      %392 = vmatpush1.msra.mxu0 0.0
      %393 = vmatprep.subr.mxu0 0.0
      %394 = vmatpush1.msra.mxu0 0.0
      %395 = vmatprep.subr.mxu0 0.0
      %396 = vmatpush1.msra.mxu0 0.0
      %397 = vmatprep.subr.mxu0 0.0
      %398 = vmatpush1.msra.mxu0 0.0
      %399 = vmatprep.subr.mxu0 0.0
      %400 = vmatpush1.msra.mxu0 0.0
      %401 = vmatprep.subr.mxu0 0.0
      %402 = vmatpush1.msra.mxu0 0.0
      %403 = vmatprep.subr.mxu0 0.0
      %404 = vmatpush1.msra.mxu0 0.0
      %405 = vmatprep.subr.mxu0 0.0
      %406 = vmatpush1.msra.mxu0 0.0
      %407 = vmatprep.subr.mxu0 0.0
      %408 = vmatpush1.msra.mxu0 0.0
      %409 = vmatprep.subr.mxu0 0.0
      %410 = vmatpush1.msra.mxu0 0.0
      %411 = vmatprep.subr.mxu0 0.0
      %412 = vmatpush1.msra.mxu0 0.0
      %413 = vmatprep.subr.mxu0 0.0
      %414 = vmatpush1.msra.mxu0 0.0
      %415 = vmatprep.subr.mxu0 0.0
      %416 = vmatpush1.msra.mxu0 0.0
      %417 = vmatprep.subr.mxu0 0.0
      %418 = vmatpush1.msra.mxu0 0.0
      %419 = vmatprep.subr.mxu0 0.0
      %420 = vmatpush1.msra.mxu0 0.0
      %421 = vmatprep.subr.mxu0 0.0
      %422 = vmatpush1.msra.mxu0 0.0
      %423 = vmatprep.subr.mxu0 0.0
      %424 = vmatpush1.msra.mxu0 0.0
      %425 = vmatprep.subr.mxu0 0.0
      %426 = vmatpush1.msra.mxu0 0.0
      %427 = vmatprep.subr.mxu0 0.0
      %428 = vmatpush1.msra.mxu0 0.0
      %429 = vmatprep.mubr.f32.mxu0 0.0
      %430 = vmatmul.mubr.f32.gmra.mrb[0].mxu0 %v283
      %v431 = vpop.f32.mrb[0].mxu0
      %v432 = vadd.f32 0.0, %v431
      %v433 = vpop.f32.mrb[0].mxu0
      %v434 = vadd.f32 0.0, %v433
      %435 = vdwg.mxu0
      %436 = vst [vmem:[%s272] sm:$0xff] %v361
      %437 = vst [vmem:[%s272 + $0x8] sm:$0xff] %v363
      %438 = vst [vmem:[%s272 + $0x10] sm:$0xff] %v432
      %439 = vst [vmem:[%s272 + $0x18] sm:$0xff] %v434
      %s440 = smul.u32 4, %s18
      %p441 = scmp.lt.s32.totalorder %s17, 1
      %s442 = scalar_select %p441, %s17, 1
      %p443 = scmp.lt.s32.totalorder %s440, 3
      %s444 = scalar_select %p443, %s440, 3
      %s445 = smul.addr %s442, 4
      %s446 = sadd.s32 %s444, %s445
      %s447 = smul.addr %s446, 8
      %s448 = scalar_lea.vmem %s2, %s447
      // Predicated region
      $region29: #{freqconv_1x1_ifft.1} parent=27 // pred_check
        %p449 = pneg %p120
      $region30: #{freqconv_1x1_ifft.1} parent=27 // pred_check_branch
        %451 = sbr.rel (%p449) target = $region32
      $region31: #{freqconv_1x1_ifft.1} parent=27 // pred_region
        %s452 = smul.u32 4, %s18
      $region32: #{freqconv_1x1_ifft.1} parent=27 // pred_fallthru
        _
    $region28: #{freqconv_1x1_ifft.1} parent=5 // pred_fallthru
      _
    %p453 = scmp.le.s32.totalorder 2, %s8
    // Predicated region
    $region33: #{freqconv_1x1_ifft.1} parent=5 // pred_check
      %p454 = pneg %p453
    $region34: #{freqconv_1x1_ifft.1} parent=5 // pred_check_branch
      %456 = sbr.rel (%p454) target = $region36
    $region35: #{freqconv_1x1_ifft.1} parent=5 // pred_region
      %s457 = ssub.s32 %s8, 2
      // Predicated region
      $region37: #{freqconv_1x1_ifft.1} parent=35 // pred_check
        %p458 = pneg %p126
      $region38: #{freqconv_1x1_ifft.1} parent=35 // pred_check_branch
        %460 = sbr.rel (%p458) target = $region40
      $region39: #{freqconv_1x1_ifft.1} parent=35 // pred_region
        %s461 = smul.u32 4, %s20
        %p462 = scmp.lt.s32.totalorder %s19, 1
        %s463 = scalar_select %p462, %s19, 1
        %p464 = scmp.lt.s32.totalorder %s461, 3
        %s465 = scalar_select %p464, %s461, 3
        %s466 = smul.addr %s463, 4
        %s467 = sadd.s32 %s465, %s466
        %s468 = smul.addr %s467, 8
        %s469 = scalar_lea.vmem %s2, %s468
      $region40: #{freqconv_1x1_ifft.1} parent=35 // pred_fallthru
        _
    $region36: #{freqconv_1x1_ifft.1} parent=5 // pred_fallthru
      _
  $region6: #{freqconv_1x1_ifft.1} parent=0 // loop_footer
    %s12 = sadd.s32 1, %s8
  $region7: #{freqconv_1x1_ifft.1} parent=0 // loop_footer_branch
    %7 = sbr.rel target = $region3
  $region8: #{freqconv_1x1_ifft.1} parent=0 // loop_exit
    _

</llo_original>
